<compile_context>
chip_gen: v5e
topology: v5e:2x2
jax: 0.10.0
libtpu: 0.0.40
codegen_flags: <defaults>
</compile_context>

<pallas_src>
import functools
import math

import jax
import jax.numpy as jnp
from jax import lax
from jax.experimental import pallas as pl
from jax.experimental.pallas import tpu as pltpu


def _round_up(x, m):
    return ((x + m - 1) // m) * m


def _vmem_limit_bytes():
    """Generation-aware VMEM budget: leave headroom on v7x, use more on v5e/v6e."""
    try:
        cap = int(pltpu.get_tpu_info().vmem_capacity_bytes)
    except Exception:
        cap = 64 * 1024 * 1024
    limit = min(cap - 16 * 1024 * 1024, 100 * 1024 * 1024)
    return int(max(32 * 1024 * 1024, limit))


def _mask_head_kernel(emb_ref, w1_ref, b1_ref, g_ref, beta_ref, w2_ref, b2_ref,
                      logits_ref, lse_ref,
                      hn_ref, m_ref, l_ref):
    """Fused Linear -> GELU(erf) -> LayerNorm -> Linear -> online LSE."""
    j = pl.program_id(1)
    nj = pl.num_programs(1)

    # ---- per-token-tile prologue: runs only on the first vocab tile --------
    @pl.when(j == 0)
    def _prologue():
        x = emb_ref[...]                                     # (TN, H) bf16
        h = jnp.dot(x, w1_ref[...],
                    preferred_element_type=jnp.float32) + b1_ref[...]
        # exact (erf) GELU, as used by transformers' `gelu`
        h = 0.5 * h * (1.0 + lax.erf(h * (1.0 / math.sqrt(2.0))))
        # LayerNorm over hidden dim, eps = 1e-12 (biased variance, torch-style)
        mu = jnp.mean(h, axis=-1, keepdims=True)
        var = jnp.mean((h - mu) * (h - mu), axis=-1, keepdims=True)
        hn = (h - mu) * lax.rsqrt(var + 1e-12)
        hn = hn * g_ref[...] + beta_ref[...]
        hn_ref[...] = hn.astype(jnp.bfloat16)                # resident for all vocab tiles
        m_ref[...] = jnp.full_like(m_ref, -jnp.inf)
        l_ref[...] = jnp.zeros_like(l_ref)

    # ---- vocab tile: projector matmul (MXU, bf16 x bf16 -> f32 acc) --------
    # Padded vocab columns carry b2 = -1e30 (set in the wrapper), so no mask
    # is needed here and the running max stays finite.
    logits = jnp.dot(hn_ref[...], w2_ref[...],
                     preferred_element_type=jnp.float32) + b2_ref[...]
    logits_ref[...] = logits.astype(logits_ref.dtype)        # bf16 writeback

    # ---- online log-sum-exp accumulators ------------------------------------
    m_prev = m_ref[...]
    m_new = jnp.maximum(m_prev, jnp.max(logits, axis=-1, keepdims=True))
    l_ref[...] = (l_ref[...] * jnp.exp(m_prev - m_new)
                  + jnp.sum(jnp.exp(logits - m_new), axis=-1, keepdims=True))
    m_ref[...] = m_new

    # ---- finalize per-token LSE on the last vocab tile ----------------------
    @pl.when(j == nj - 1)
    def _finalize():
        lse_ref[...] = m_ref[...] + jnp.log(l_ref[...])


def mask_head_forward(embeddings, labels, params,
                      *, tile_n_max=1024, tile_v_max=2048):
    """embeddings: (B, S, H) f32, labels: (B, S) int32.

    Returns (loss, logits). Logits are returned in bfloat16 (kernel writeback
    precision); the loss is computed in float32.
    """
    b, s, h = embeddings.shape
    n = b * s
    w1, b1, gamma, beta, w2, b2 = params
    v = w2.shape[1]

    tile_n = min(tile_n_max, _round_up(n, 8))
    n_pad = _round_up(n, tile_n)
    tile_v = min(tile_v_max, _round_up(v, 128))
    v_pad = _round_up(v, tile_v)

    # Flatten tokens and pad to tile boundaries.
    x2d = embeddings.reshape(n, h).astype(jnp.bfloat16)
    x2d = jnp.pad(x2d, ((0, n_pad - n), (0, 0)))

    # bf16 weights for the MXU (f32 accumulation inside the kernel).
    # Padded vocab columns: W2 = 0, b2 = -1e30 (finite, never wins the max,
    # underflows to 0 in exp, and is sliced away before returning).
    w1b = w1.astype(jnp.bfloat16)
    w2b = jnp.pad(w2, ((0, 0), (0, v_pad - v))).astype(jnp.bfloat16)
    b2p = jnp.pad(b2, ((0, 0), (0, v_pad - v)), constant_values=-1e30)

    n_token_tiles = n_pad // tile_n
    grid = (n_token_tiles, v_pad // tile_v)

    cost = pl.CostEstimate(
        flops=2 * n_pad * h * (h + v_pad),
        transcendentals=n_pad * (v_pad + h),
        bytes_accessed=(n_pad * h * 2                      # embeddings (bf16)
                        + n_token_tiles * h * v_pad * 2    # W2 restream per token tile
                        + n_pad * v_pad * 2                # bf16 logits writeback
                        + h * h * 2 + n_pad * 4),
    )

    logits_flat, lse_out = pl.pallas_call(
        _mask_head_kernel,
        grid=grid,
        in_specs=[
            pl.BlockSpec((tile_n, h), lambda i, j: (i, 0)),       # embeddings tile
            pl.BlockSpec((h, h), lambda i, j: (0, 0)),            # W1 (resident)
            pl.BlockSpec((1, h), lambda i, j: (0, 0)),            # b1
            pl.BlockSpec((1, h), lambda i, j: (0, 0)),            # gamma
            pl.BlockSpec((1, h), lambda i, j: (0, 0)),            # beta
            pl.BlockSpec((h, tile_v), lambda i, j: (0, j)),       # W2 vocab tile
            pl.BlockSpec((1, tile_v), lambda i, j: (0, j)),       # b2 vocab tile
        ],
        out_specs=(
            pl.BlockSpec((tile_n, tile_v), lambda i, j: (i, j)),  # bf16 logits tile
            pl.BlockSpec((tile_n, 1), lambda i, j: (i, 0)),       # per-token LSE
        ),
        out_shape=(
            jax.ShapeDtypeStruct((n_pad, v_pad), jnp.bfloat16),
            jax.ShapeDtypeStruct((n_pad, 1), jnp.float32),
        ),
        scratch_shapes=[
            pltpu.VMEM((tile_n, h), jnp.bfloat16),   # hn (resident across vocab tiles)
            pltpu.VMEM((tile_n, 1), jnp.float32),    # running max
            pltpu.VMEM((tile_n, 1), jnp.float32),    # running sum-exp
        ],
        compiler_params=pltpu.CompilerParams(
            dimension_semantics=("parallel", "arbitrary"),
            vmem_limit_bytes=_vmem_limit_bytes()),
        cost_estimate=cost,
    )(x2d, w1b, b1, gamma, beta, w2b, b2p)

    logits = logits_flat[:n, :v].reshape(b, s, v)

    # CrossEntropyLoss(mean, ignore_index=-100) over flattened tokens:
    # picked label logit is gathered from the returned logits in plain JAX.
    lbl_flat = labels.reshape(n)
    safe_lbl = jnp.clip(lbl_flat, 0, v - 1)
    picked = jnp.take_along_axis(
        logits_flat[:n], safe_lbl[:, None], axis=-1)[:, 0].astype(jnp.float32)
    lse = lse_out[:n, 0]
    valid = (lbl_flat >= 0).astype(jnp.float32)
    count = jnp.sum(valid)
    # NOTE: torch returns NaN (0/0) when every label is ignored; we clamp to
    # keep the loss finite in that degenerate case.
    loss = jnp.sum((lse - picked) * valid) / jnp.maximum(count, 1.0)
    return loss, logits


def init_params(key, hidden_size, vocab_size):
    """Deterministic synthetic parameters matching mask_head.__init__ shapes."""
    k1, k2, k3, k4 = jax.random.split(key, 4)
    w1 = jax.random.normal(k1, (hidden_size, hidden_size), jnp.float32) * 0.02
    b1 = jax.random.normal(k2, (1, hidden_size), jnp.float32) * 0.02
    gamma = jnp.ones((1, hidden_size), jnp.float32)
    beta = jnp.zeros((1, hidden_size), jnp.float32)
    w2 = jax.random.normal(k3, (hidden_size, vocab_size), jnp.float32) * 0.02
    b2 = jax.random.normal(k4, (1, vocab_size), jnp.float32) * 0.02
    return (w1, b1, gamma, beta, w2, b2)


def _reference_forward(embeddings, labels, params):
    """Pure-JAX f32 reference of the torch module (for a sanity check)."""
    w1, b1, gamma, beta, w2, b2 = params
    b, s, h = embeddings.shape
    x = embeddings.reshape(-1, h)
    hvec = x @ w1 + b1
    hvec = 0.5 * hvec * (1.0 + lax.erf(hvec / math.sqrt(2.0)))
    mu = jnp.mean(hvec, axis=-1, keepdims=True)
    var = jnp.mean((hvec - mu) ** 2, axis=-1, keepdims=True)
    hn = (hvec - mu) * lax.rsqrt(var + 1e-12) * gamma + beta
    logits = hn @ w2 + b2
    lbl = labels.reshape(-1)
    m = jnp.max(logits, axis=-1, keepdims=True)
    lse = m[:, 0] + jnp.log(jnp.sum(jnp.exp(logits - m), axis=-1))
    picked = jnp.take_along_axis(logits, jnp.maximum(lbl, 0)[:, None], axis=-1)[:, 0]
    valid = (lbl >= 0).astype(jnp.float32)
    loss = jnp.sum((lse - picked) * valid) / jnp.maximum(jnp.sum(valid), 1.0)
    return loss, logits.reshape(b, s, -1)


if __name__ == "__main__":
    B, S, H, V = 2, 8, 32, 128   # small shapes; real model: H=768, V=30552
    key = jax.random.PRNGKey(0)
    k_emb, k_lbl, k_par = jax.random.split(key, 3)

    embeddings = jax.random.normal(k_emb, (B, S, H), jnp.float32)
    labels = jax.random.randint(k_lbl, (B, S), 0, V, jnp.int32)
    params = init_params(k_par, H, V)

    loss, logits = jax.jit(mask_head_forward)(embeddings, labels, params)
    jax.block_until_ready((loss, logits))

    ref_loss, ref_logits = _reference_forward(embeddings, labels, params)

    assert logits.shape == (B, S, V)
    assert loss.shape == ()
    assert bool(jnp.isfinite(loss))
    # bf16 MXU operands / bf16 logits writeback vs f32 reference -> loose tolerance
    assert bool(jnp.allclose(logits.astype(jnp.float32), ref_logits,
                             rtol=5e-2, atol=5e-2))
    assert bool(jnp.allclose(loss, ref_loss, rtol=5e-2, atol=5e-2))
    print("KERNEL_OK")
</pallas_src>

<mosaic_0001>
module attributes {stable_mosaic.version = 11 : i64} {
  func.func @_mask_head_kernel(%arg0: i32, %arg1: i32, %arg2: memref<16x32xbf16, #tpu.memory_space<vmem>>, %arg3: memref<32x32xbf16, #tpu.memory_space<vmem>>, %arg4: memref<1x32xf32, #tpu.memory_space<vmem>>, %arg5: memref<1x32xf32, #tpu.memory_space<vmem>>, %arg6: memref<1x32xf32, #tpu.memory_space<vmem>>, %arg7: memref<32x128xbf16, #tpu.memory_space<vmem>>, %arg8: memref<1x128xf32, #tpu.memory_space<vmem>>, %arg9: memref<16x128xbf16, #tpu.memory_space<vmem>>, %arg10: memref<16x1xf32, #tpu.memory_space<vmem>>, %arg11: memref<16x32xbf16, #tpu.memory_space<vmem>>, %arg12: memref<16x1xf32, #tpu.memory_space<vmem>>, %arg13: memref<16x1xf32, #tpu.memory_space<vmem>>) attributes {dimension_semantics = [#tpu.dimension_semantics<parallel>, #tpu.dimension_semantics<arbitrary>], iteration_bounds = array<i64: 1, 1>, scalar_prefetch = 0 : i64, scratch_operands = 3 : i64, tpu.core_type = #tpu.core_type<tc>, window_params = [{transform_indices = @transform_0, window_bounds = array<i64: 16, 32>}, {pipeline_mode = #tpu.pipeline_mode<synchronous>, transform_indices = @transform_1, window_bounds = array<i64: 32, 32>}, {pipeline_mode = #tpu.pipeline_mode<synchronous>, transform_indices = @transform_2, window_bounds = array<i64: 1, 32>}, {pipeline_mode = #tpu.pipeline_mode<synchronous>, transform_indices = @transform_3, window_bounds = array<i64: 1, 32>}, {pipeline_mode = #tpu.pipeline_mode<synchronous>, transform_indices = @transform_4, window_bounds = array<i64: 1, 32>}, {transform_indices = @transform_5, window_bounds = array<i64: 32, 128>}, {transform_indices = @transform_6, window_bounds = array<i64: 1, 128>}, {transform_indices = @transform_7, window_bounds = array<i64: 16, 128>}, {transform_indices = @transform_8, window_bounds = array<i64: 16, 1>}]} {
    %c0_i32 = arith.constant 0 : i32
    %0 = arith.cmpi eq, %arg1, %c0_i32 : i32
    %1 = arith.extui %0 : i1 to i32
    %c0_i32_0 = arith.constant 0 : i32
    %2 = arith.cmpi ne, %1, %c0_i32_0 : i32
    scf.if %2 {
      %c0_20 = arith.constant 0 : index
      %c0_21 = arith.constant 0 : index
      %30 = vector.load %arg2[%c0_20, %c0_21] : memref<16x32xbf16, #tpu.memory_space<vmem>>, vector<16x32xbf16>
      %c0_22 = arith.constant 0 : index
      %c0_23 = arith.constant 0 : index
      %31 = vector.load %arg3[%c0_22, %c0_23] : memref<32x32xbf16, #tpu.memory_space<vmem>>, vector<32x32xbf16>
      %cst_24 = arith.constant dense<0.000000e+00> : vector<16x32xf32>
      %32 = tpu.matmul %30, %31, %cst_24 {dimension_numbers = #tpu.dot_dimension_numbers<[1], [0], [0], [1], [0, 0, 1, 1], [], []>} : vector<16x32xbf16>, vector<32x32xbf16>, vector<16x32xf32> -> vector<16x32xf32>
      %c0_25 = arith.constant 0 : index
      %c0_26 = arith.constant 0 : index
      %33 = vector.load %arg4[%c0_25, %c0_26] : memref<1x32xf32, #tpu.memory_space<vmem>>, vector<1x32xf32>
      %34 = vector.broadcast %33 : vector<1x32xf32> to vector<16x32xf32>
      %35 = arith.addf %32, %34 : vector<16x32xf32>
      %cst_27 = arith.constant 5.000000e-01 : f32
      %36 = vector.broadcast %cst_27 : f32 to vector<16x32xf32>
      %37 = arith.mulf %36, %35 : vector<16x32xf32>
      %cst_28 = arith.constant 0.707106769 : f32
      %38 = vector.broadcast %cst_28 : f32 to vector<16x32xf32>
      %39 = arith.mulf %35, %38 : vector<16x32xf32>
      %40 = math.erf %39 : vector<16x32xf32>
      %cst_29 = arith.constant 1.000000e+00 : f32
      %41 = vector.broadcast %cst_29 : f32 to vector<16x32xf32>
      %42 = arith.addf %41, %40 : vector<16x32xf32>
      %43 = arith.mulf %37, %42 : vector<16x32xf32>
      %cst_30 = arith.constant dense<0.000000e+00> : vector<16xf32>
      %44 = vector.multi_reduction <add>, %43, %cst_30 [1] : vector<16x32xf32> to vector<16xf32>
      %45 = vector.shape_cast %44 : vector<16xf32> to vector<16x1xf32>
      %cst_31 = arith.constant 3.200000e+01 : f32
      %46 = vector.broadcast %cst_31 : f32 to vector<16x1xf32>
      %47 = arith.divf %45, %46 : vector<16x1xf32>
      %48 = vector.broadcast %47 : vector<16x1xf32> to vector<16x32xf32>
      %49 = arith.subf %43, %48 : vector<16x32xf32>
      %50 = vector.broadcast %47 : vector<16x1xf32> to vector<16x32xf32>
      %51 = arith.subf %43, %50 : vector<16x32xf32>
      %52 = arith.mulf %49, %51 : vector<16x32xf32>
      %cst_32 = arith.constant dense<0.000000e+00> : vector<16xf32>
      %53 = vector.multi_reduction <add>, %52, %cst_32 [1] : vector<16x32xf32> to vector<16xf32>
      %54 = vector.shape_cast %53 : vector<16xf32> to vector<16x1xf32>
      %cst_33 = arith.constant 3.200000e+01 : f32
      %55 = vector.broadcast %cst_33 : f32 to vector<16x1xf32>
      %56 = arith.divf %54, %55 : vector<16x1xf32>
      %57 = vector.broadcast %47 : vector<16x1xf32> to vector<16x32xf32>
      %58 = arith.subf %43, %57 : vector<16x32xf32>
      %cst_34 = arith.constant 9.99999996E-13 : f32
      %59 = vector.broadcast %cst_34 : f32 to vector<16x1xf32>
      %60 = arith.addf %56, %59 : vector<16x1xf32>
      %61 = math.rsqrt %60 : vector<16x1xf32>
      %62 = vector.broadcast %61 : vector<16x1xf32> to vector<16x32xf32>
      %63 = arith.mulf %58, %62 : vector<16x32xf32>
      %c0_35 = arith.constant 0 : index
      %c0_36 = arith.constant 0 : index
      %64 = vector.load %arg5[%c0_35, %c0_36] : memref<1x32xf32, #tpu.memory_space<vmem>>, vector<1x32xf32>
      %65 = vector.broadcast %64 : vector<1x32xf32> to vector<16x32xf32>
      %66 = arith.mulf %63, %65 : vector<16x32xf32>
      %c0_37 = arith.constant 0 : index
      %c0_38 = arith.constant 0 : index
      %67 = vector.load %arg6[%c0_37, %c0_38] : memref<1x32xf32, #tpu.memory_space<vmem>>, vector<1x32xf32>
      %68 = vector.broadcast %67 : vector<1x32xf32> to vector<16x32xf32>
      %69 = arith.addf %66, %68 : vector<16x32xf32>
      %70 = arith.truncf %69 : vector<16x32xf32> to vector<16x32xbf16>
      %c0_39 = arith.constant 0 : index
      %c0_40 = arith.constant 0 : index
      %71 = vector.load %arg11[%c0_39, %c0_40] : memref<16x32xbf16, #tpu.memory_space<vmem>>, vector<16x32xbf16>
      tpu.vector_store %arg11[%c0_39, %c0_40], %70 {strides = array<i32>} : memref<16x32xbf16, #tpu.memory_space<vmem>>, vector<16x32xbf16>,
      %cst_41 = arith.constant 0xFF800000 : f32
      %72 = vector.broadcast %cst_41 : f32 to vector<16x1xf32>
      %c0_42 = arith.constant 0 : index
      %c0_43 = arith.constant 0 : index
      %73 = vector.load %arg12[%c0_42, %c0_43] : memref<16x1xf32, #tpu.memory_space<vmem>>, vector<16x1xf32>
      tpu.vector_store %arg12[%c0_42, %c0_43], %72 {strides = array<i32>} : memref<16x1xf32, #tpu.memory_space<vmem>>, vector<16x1xf32>,
      %cst_44 = arith.constant 0.000000e+00 : f32
      %74 = vector.broadcast %cst_44 : f32 to vector<16x1xf32>
      %c0_45 = arith.constant 0 : index
      %c0_46 = arith.constant 0 : index
      %75 = vector.load %arg13[%c0_45, %c0_46] : memref<16x1xf32, #tpu.memory_space<vmem>>, vector<16x1xf32>
      tpu.vector_store %arg13[%c0_45, %c0_46], %74 {strides = array<i32>} : memref<16x1xf32, #tpu.memory_space<vmem>>, vector<16x1xf32>,
    } else {
    }
    %c0 = arith.constant 0 : index
    %c0_1 = arith.constant 0 : index
    %3 = vector.load %arg11[%c0, %c0_1] : memref<16x32xbf16, #tpu.memory_space<vmem>>, vector<16x32xbf16>
    %c0_2 = arith.constant 0 : index
    %c0_3 = arith.constant 0 : index
    %4 = vector.load %arg7[%c0_2, %c0_3] : memref<32x128xbf16, #tpu.memory_space<vmem>>, vector<32x128xbf16>
    %cst = arith.constant dense<0.000000e+00> : vector<16x128xf32>
    %5 = tpu.matmul %3, %4, %cst {dimension_numbers = #tpu.dot_dimension_numbers<[1], [0], [0], [1], [0, 0, 1, 1], [], []>} : vector<16x32xbf16>, vector<32x128xbf16>, vector<16x128xf32> -> vector<16x128xf32>
    %c0_4 = arith.constant 0 : index
    %c0_5 = arith.constant 0 : index
    %6 = vector.load %arg8[%c0_4, %c0_5] : memref<1x128xf32, #tpu.memory_space<vmem>>, vector<1x128xf32>
    %7 = vector.broadcast %6 : vector<1x128xf32> to vector<16x128xf32>
    %8 = arith.addf %5, %7 : vector<16x128xf32>
    %9 = arith.truncf %8 : vector<16x128xf32> to vector<16x128xbf16>
    %c0_6 = arith.constant 0 : index
    %c0_7 = arith.constant 0 : index
    %10 = vector.load %arg9[%c0_6, %c0_7] : memref<16x128xbf16, #tpu.memory_space<vmem>>, vector<16x128xbf16>
    tpu.vector_store %arg9[%c0_6, %c0_7], %9 {strides = array<i32>} : memref<16x128xbf16, #tpu.memory_space<vmem>>, vector<16x128xbf16>,
    %c0_8 = arith.constant 0 : index
    %c0_9 = arith.constant 0 : index
    %11 = vector.load %arg12[%c0_8, %c0_9] : memref<16x1xf32, #tpu.memory_space<vmem>>, vector<16x1xf32>
    %cst_10 = arith.constant dense<0xFF800000> : vector<16xf32>
    %12 = vector.multi_reduction <maximumf>, %8, %cst_10 [1] : vector<16x128xf32> to vector<16xf32>
    %13 = vector.shape_cast %12 : vector<16xf32> to vector<16x1xf32>
    %14 = arith.maximumf %11, %13 : vector<16x1xf32>
    %c0_11 = arith.constant 0 : index
    %c0_12 = arith.constant 0 : index
    %15 = vector.load %arg13[%c0_11, %c0_12] : memref<16x1xf32, #tpu.memory_space<vmem>>, vector<16x1xf32>
    %16 = arith.subf %11, %14 : vector<16x1xf32>
    %17 = math.exp %16 : vector<16x1xf32>
    %18 = arith.mulf %15, %17 : vector<16x1xf32>
    %19 = vector.broadcast %14 : vector<16x1xf32> to vector<16x128xf32>
    %20 = arith.subf %8, %19 : vector<16x128xf32>
    %21 = math.exp %20 : vector<16x128xf32>
    %cst_13 = arith.constant dense<0.000000e+00> : vector<16xf32>
    %22 = vector.multi_reduction <add>, %21, %cst_13 [1] : vector<16x128xf32> to vector<16xf32>
    %23 = vector.shape_cast %22 : vector<16xf32> to vector<16x1xf32>
    %24 = arith.addf %18, %23 : vector<16x1xf32>
    %c0_14 = arith.constant 0 : index
    %c0_15 = arith.constant 0 : index
    %25 = vector.load %arg13[%c0_14, %c0_15] : memref<16x1xf32, #tpu.memory_space<vmem>>, vector<16x1xf32>
    tpu.vector_store %arg13[%c0_14, %c0_15], %24 {strides = array<i32>} : memref<16x1xf32, #tpu.memory_space<vmem>>, vector<16x1xf32>,
    %c0_16 = arith.constant 0 : index
    %c0_17 = arith.constant 0 : index
    %26 = vector.load %arg12[%c0_16, %c0_17] : memref<16x1xf32, #tpu.memory_space<vmem>>, vector<16x1xf32>
    tpu.vector_store %arg12[%c0_16, %c0_17], %14 {strides = array<i32>} : memref<16x1xf32, #tpu.memory_space<vmem>>, vector<16x1xf32>,
    %c0_i32_18 = arith.constant 0 : i32
    %27 = arith.cmpi eq, %arg1, %c0_i32_18 : i32
    %28 = arith.extui %27 : i1 to i32
    %c0_i32_19 = arith.constant 0 : i32
    %29 = arith.cmpi ne, %28, %c0_i32_19 : i32
    scf.if %29 {
      %c0_20 = arith.constant 0 : index
      %c0_21 = arith.constant 0 : index
      %30 = vector.load %arg12[%c0_20, %c0_21] : memref<16x1xf32, #tpu.memory_space<vmem>>, vector<16x1xf32>
      %c0_22 = arith.constant 0 : index
      %c0_23 = arith.constant 0 : index
      %31 = vector.load %arg13[%c0_22, %c0_23] : memref<16x1xf32, #tpu.memory_space<vmem>>, vector<16x1xf32>
      %32 = math.log %31 : vector<16x1xf32>
      %33 = arith.addf %30, %32 : vector<16x1xf32>
      %c0_24 = arith.constant 0 : index
      %c0_25 = arith.constant 0 : index
      %34 = vector.load %arg10[%c0_24, %c0_25] : memref<16x1xf32, #tpu.memory_space<vmem>>, vector<16x1xf32>
      tpu.vector_store %arg10[%c0_24, %c0_25], %33 {strides = array<i32>} : memref<16x1xf32, #tpu.memory_space<vmem>>, vector<16x1xf32>,
    } else {
    }
    return
  }
  func.func @transform_0(%arg0: i32, %arg1: i32) -> (i32, i32) {
    %c0_i32 = arith.constant 0 : i32
    %c0_i32_0 = arith.constant 0 : i32
    return %arg0, %c0_i32 : i32, i32
  }
  func.func @transform_1(%arg0: i32, %arg1: i32) -> (i32, i32) {
    %c0_i32 = arith.constant 0 : i32
    %c0_i32_0 = arith.constant 0 : i32
    %c0_i32_1 = arith.constant 0 : i32
    return %c0_i32, %c0_i32_0 : i32, i32
  }
  func.func @transform_2(%arg0: i32, %arg1: i32) -> (i32, i32) {
    %c0_i32 = arith.constant 0 : i32
    %c0_i32_0 = arith.constant 0 : i32
    %c0_i32_1 = arith.constant 0 : i32
    return %c0_i32, %c0_i32_0 : i32, i32
  }
  func.func @transform_3(%arg0: i32, %arg1: i32) -> (i32, i32) {
    %c0_i32 = arith.constant 0 : i32
    %c0_i32_0 = arith.constant 0 : i32
    %c0_i32_1 = arith.constant 0 : i32
    return %c0_i32, %c0_i32_0 : i32, i32
  }
  func.func @transform_4(%arg0: i32, %arg1: i32) -> (i32, i32) {
    %c0_i32 = arith.constant 0 : i32
    %c0_i32_0 = arith.constant 0 : i32
    %c0_i32_1 = arith.constant 0 : i32
    return %c0_i32, %c0_i32_0 : i32, i32
  }
  func.func @transform_5(%arg0: i32, %arg1: i32) -> (i32, i32) {
    %c0_i32 = arith.constant 0 : i32
    %c0_i32_0 = arith.constant 0 : i32
    return %c0_i32, %arg1 : i32, i32
  }
  func.func @transform_6(%arg0: i32, %arg1: i32) -> (i32, i32) {
    %c0_i32 = arith.constant 0 : i32
    %c0_i32_0 = arith.constant 0 : i32
    return %c0_i32, %arg1 : i32, i32
  }
  func.func @transform_7(%arg0: i32, %arg1: i32) -> (i32, i32) {
    %c0_i32 = arith.constant 0 : i32
    return %arg0, %arg1 : i32, i32
  }
  func.func @transform_8(%arg0: i32, %arg1: i32) -> (i32, i32) {
    %c0_i32 = arith.constant 0 : i32
    %c0_i32_0 = arith.constant 0 : i32
    return %arg0, %c0_i32 : i32, i32
  }
}

</mosaic_0001>

<llo_original>
// kernel: mask_head_forward.1
$region0: #{mask_head_forward.1}
  #allocation0 [shape = 'u32[]', space=smem, size = 0x4, offset = 0x4, fixed_abs, tag = 'smem constant byte address 0x4 - core index']
  #allocation1 [shape = 'u32[72,128]{1,0:T(1,128)}', space=vmem, size = 0x9000, scoped, tag = 'internal scratch']
  #allocation2 [shape = 'bf16[16,32]{1,0:T(8,128)(2,1)}', space=vmem, size = 0x1000, scoped, tag = 'scratch operand']
  #allocation3 [shape = 'f32[16,1]{1,0:T(8,128)}', space=vmem, size = 0x2000, scoped, tag = 'scratch operand']
  #allocation4 [shape = 'f32[16,1]{1,0:T(8,128)}', space=vmem, size = 0x2000, scoped, tag = 'scratch operand']
  %s0 = inlined_call_operand.vmem [shape: bf16[16,32], index: 0, kind: input, shape index: {}]
  %s1 = inlined_call_operand.vmem [shape: bf16[32,32], index: 1, kind: input, shape index: {}]
  %s2 = inlined_call_operand.vmem [shape: f32[1,32], index: 2, kind: input, shape index: {}]
  %s3 = inlined_call_operand.vmem [shape: f32[1,32], index: 3, kind: input, shape index: {}]
  %s4 = inlined_call_operand.vmem [shape: f32[1,32], index: 4, kind: input, shape index: {}]
  %s5 = inlined_call_operand.vmem [shape: bf16[32,128], index: 5, kind: input, shape index: {}]
  %s6 = inlined_call_operand.vmem [shape: f32[1,128], index: 6, kind: input, shape index: {}]
  %s7 = inlined_call_operand.vmem [shape: bf16[16,128], index: 7, kind: output, shape index: {0}]
  %s8 = inlined_call_operand.vmem [shape: f32[16,1], index: 8, kind: output, shape index: {1}]
  %9 = xla_tuple %s7, %s8
  %s10 = sld [smem:[#allocation0]]
  $region54: #{mask_head_forward.1} parent=0
    _
  %s12 = ssub.s32 1, %s10
  %s13 = scalar_select 0, %s12, %s10
  // Predicated region
  $region2: #{mask_head_forward.1} parent=0 // pred_check
    _
  $region3: #{mask_head_forward.1} parent=0 // pred_check_branch
    %15 = sbr.rel (0) target = $region5
  $region4: #{mask_head_forward.1} parent=0 // pred_region
    _
  $region5: #{mask_head_forward.1} parent=0 // pred_fallthru
    _
  // Predicated region
  $region6: #{mask_head_forward.1} parent=0 // pred_check
    _
  $region7: #{mask_head_forward.1} parent=0 // pred_check_branch
    %17 = sbr.rel (0) target = $region9
  $region8: #{mask_head_forward.1} parent=0 // pred_region
    _
  $region9: #{mask_head_forward.1} parent=0 // pred_fallthru
    _
  // Predicated region
  $region10: #{mask_head_forward.1} parent=0 // pred_check
    _
  $region11: #{mask_head_forward.1} parent=0 // pred_check_branch
    %19 = sbr.rel (0) target = $region13
  $region12: #{mask_head_forward.1} parent=0 // pred_region
    _
  $region13: #{mask_head_forward.1} parent=0 // pred_fallthru
    _
  // Predicated region
  $region14: #{mask_head_forward.1} parent=0 // pred_check
    _
  $region15: #{mask_head_forward.1} parent=0 // pred_check_branch
    %21 = sbr.rel (0) target = $region17
  $region16: #{mask_head_forward.1} parent=0 // pred_region
    _
  $region17: #{mask_head_forward.1} parent=0 // pred_fallthru
    _
  // Predicated region
  $region18: #{mask_head_forward.1} parent=0 // pred_check
    _
  $region19: #{mask_head_forward.1} parent=0 // pred_check_branch
    %23 = sbr.rel (0) target = $region21
  $region20: #{mask_head_forward.1} parent=0 // pred_region
    _
  $region21: #{mask_head_forward.1} parent=0 // pred_fallthru
    _
  // Predicated region
  $region22: #{mask_head_forward.1} parent=0 // pred_check
    _
  $region23: #{mask_head_forward.1} parent=0 // pred_check_branch
    %25 = sbr.rel (0) target = $region25
  $region24: #{mask_head_forward.1} parent=0 // pred_region
    _
  $region25: #{mask_head_forward.1} parent=0 // pred_fallthru
    _
  // Predicated region
  $region26: #{mask_head_forward.1} parent=0 // pred_check
    _
  $region27: #{mask_head_forward.1} parent=0 // pred_check_branch
    %27 = sbr.rel (0) target = $region29
  $region28: #{mask_head_forward.1} parent=0 // pred_region
    _
  $region29: #{mask_head_forward.1} parent=0 // pred_fallthru
    _
  %p29 = scmp.eq.s32.totalorder 0, 0
  // Predicated region
  $region30: #{mask_head_forward.1} parent=0 // pred_check
    %p30 = pneg %p29
  $region31: #{mask_head_forward.1} parent=0 // pred_check_branch
    %32 = sbr.rel (%p30) target = $region33
  $region32: #{mask_head_forward.1} parent=0 // pred_region
    %v33 = vld [vmem:[%s0] sm:$0xf]
    %v34 = vld [vmem:[%s0 + $0x4] sm:$0xf]
    %v35 = vld [vmem:[%s1] sm:$0xf]
    %v36 = vld [vmem:[%s1 + $0x4] sm:$0xf]
    %v37 = vld [vmem:[%s1 + $0x8] sm:$0xf]
    %v38 = vld [vmem:[%s1 + $0xc] sm:$0xf]
    %v39 = vld [vmem:[%s2] sm:$0x1]
    %v41 = vperm.slane %v39, 0
    %v45 = vunpack.c.l.b16 %v33
    %v46 = vunpack.c.l.b16 %v34
    %v47 = vpack.c.b16 %v46, %v45
    %v52 = vunpack.c.l.b16 %v35
    %v53 = vunpack.c.l.b16 %v36
    %v54 = vunpack.c.l.b16 %v37
    %v55 = vunpack.c.l.b16 %v38
    %v56 = vpack.c.b16 %v53, %v52
    %v57 = vpack.c.b16 %v55, %v54
    %vm60 = vcmask 261120
    %v62 = vsel %vm60, %v47, 0
    %64 = vmatpush.bf16.msra.mxu0 0
    %65 = vmatpush.bf16.msra.mxu0 0
    %66 = vmatpush.bf16.msra.mxu0 0
    %67 = vmatpush.bf16.msra.mxu0 0
    %68 = vmatpush.bf16.msra.mxu0 0
    %69 = vmatpush.bf16.msra.mxu0 0
    %70 = vmatpush.bf16.msra.mxu0 %v57
    %71 = vmatpush.bf16.msra.mxu0 %v56
    %72 = vmatmul.bf16.gmra.mxu0 %v62
    %v73 = vpop.f32.mrf.mxu0
    %v74 = vadd.f32 %v41, %v73
    %v75 = vpop.f32.mrf.mxu0
    %v76 = vadd.f32 %v41, %v75
    %77 = vdwg.mxu0
    %v78 = vmul.f32 %v74, 0.5
    %v79 = vmul.f32 %v76, 0.5
    %v80 = vmul.f32 %v74, 0.70710677
    %v81 = vmul.f32 %v76, 0.70710677
    %v82 = vmul.f32 %v80, %v80
    %v83 = vmin.f32 16.0, %v82
    %v84 = vmul.f32 %v83, 2.1237322e-06
    %v85 = vadd.f32 %v84, 0.00028619796
    %v86 = vmul.f32 %v83, %v85
    %v87 = vadd.f32 %v86, 0.0036580483
    %v88 = vmul.f32 %v83, %v87
    %v89 = vadd.f32 %v88, 0.05243302
    %v90 = vmul.f32 %v83, %v89
    %v91 = vadd.f32 %v90, 0.18741608
    %v92 = vmul.f32 %v83, %v91
    %v93 = vadd.f32 %v92, 1.1283791
    %v94 = vmul.f32 %v80, %v93
    %v95 = vmul.f32 %v83, 3.8918573e-05
    %v96 = vadd.f32 %v95, 0.001143296
    %v97 = vmul.f32 %v83, %v96
    %v98 = vadd.f32 %v97, 0.014752088
    %v99 = vmul.f32 %v83, %v98
    %v100 = vadd.f32 %v99, 0.112945676
    %v101 = vmul.f32 %v83, %v100
    %v102 = vadd.f32 %v101, 0.4994258
    %v103 = vmul.f32 %v83, %v102
    %v104 = vadd.f32 %v103, 1.0
    %v105 = vrcp.pop %v104
    %v106 = vmul.f32 %v104, %v105
    %v107 = vsub.f32 1.0, %v106
    %v108 = vmul.f32 %v105, %v107
    %v109 = vadd.f32 %v105, %v108
    %vm110 = vweird.f32 %v104
    %vm111 = vweird.f32 %v105
    %vm112 = vmor %vm110, %vm111
    %v113 = vsel %vm112, %v105, %v109
    %v114 = vand.u32 2147483647, %v104
    %vm115 = vcmp.eq.f32.partialorder %v114, 8.507059e+37
    %v116 = vand.u32 %v104, 2147483648
    %v117 = vor.u32 1.1754944e-38, %v116
    %v118 = vsel %vm115, %v117, %v113
    %v119 = vmul.f32 %v94, %v118
    %v120 = vmin.f32 %v119, 1.0
    %v121 = vmax.f32 %v120, -1.0
    %v122 = vmul.f32 %v81, %v81
    %v123 = vmin.f32 16.0, %v122
    %v124 = vmul.f32 %v123, 2.1237322e-06
    %v125 = vadd.f32 %v124, 0.00028619796
    %v126 = vmul.f32 %v123, %v125
    %v127 = vadd.f32 %v126, 0.0036580483
    %v128 = vmul.f32 %v123, %v127
    %v129 = vadd.f32 %v128, 0.05243302
    %v130 = vmul.f32 %v123, %v129
    %v131 = vadd.f32 %v130, 0.18741608
    %v132 = vmul.f32 %v123, %v131
    %v133 = vadd.f32 %v132, 1.1283791
    %v134 = vmul.f32 %v81, %v133
    %v135 = vmul.f32 %v123, 3.8918573e-05
    %v136 = vadd.f32 %v135, 0.001143296
    %v137 = vmul.f32 %v123, %v136
    %v138 = vadd.f32 %v137, 0.014752088
    %v139 = vmul.f32 %v123, %v138
    %v140 = vadd.f32 %v139, 0.112945676
    %v141 = vmul.f32 %v123, %v140
    %v142 = vadd.f32 %v141, 0.4994258
    %v143 = vmul.f32 %v123, %v142
    %v144 = vadd.f32 %v143, 1.0
    %v145 = vrcp.pop %v144
    %v146 = vmul.f32 %v144, %v145
    %v147 = vsub.f32 1.0, %v146
    %v148 = vmul.f32 %v145, %v147
    %v149 = vadd.f32 %v145, %v148
    %vm150 = vweird.f32 %v144
    %vm151 = vweird.f32 %v145
    %vm152 = vmor %vm150, %vm151
    %v153 = vsel %vm152, %v145, %v149
    %v154 = vand.u32 2147483647, %v144
    %vm155 = vcmp.eq.f32.partialorder %v154, 8.507059e+37
    %v156 = vand.u32 %v144, 2147483648
    %v157 = vor.u32 1.1754944e-38, %v156
    %v158 = vsel %vm155, %v157, %v153
    %v159 = vmul.f32 %v134, %v158
    %v160 = vmin.f32 %v159, 1.0
    %v161 = vmax.f32 %v160, -1.0
    %v162 = vadd.f32 %v121, 1.0
    %v163 = vadd.f32 %v161, 1.0
    %v164 = vmul.f32 %v78, %v162
    %v165 = vmul.f32 %v79, %v163
    %v166 = vsel %vm60, %v164, 0.0
    %167 = vadd.xlane.f32.xlu0 %v166
    %v168 = vpop.xlane.xlu0 %167
    %v169 = vsel %vm60, %v165, 0.0
    %170 = vadd.xlane.f32.xlu0 %v169
    %v171 = vpop.xlane.xlu0 %170
    %v172 = vrcp.pop 32.0
    %v173 = vmul.f32 32.0, %v172
    %v174 = vsub.f32 1.0, %v173
    %v175 = vmul.f32 %v172, %v174
    %v176 = vadd.f32 %v172, %v175
    %vm177 = vweird.f32 %v172
    %v178 = vsel %vm177, %v172, %v176
    %v179 = vmul.f32 %v168, %v178
    %v180 = vmul.f32 %v171, %v178
    %v181 = vsub.f32 %v164, %v179
    %v182 = vsub.f32 %v165, %v180
    %v183 = vmul.f32 %v181, %v181
    %v184 = vmul.f32 %v182, %v182
    %v185 = vsel %vm60, %v183, 0.0
    %186 = vadd.xlane.f32.xlu0 %v185
    %v187 = vpop.xlane.xlu0 %186
    %v188 = vsel %vm60, %v184, 0.0
    %189 = vadd.xlane.f32.xlu0 %v188
    %v190 = vpop.xlane.xlu0 %189
    %v191 = vmul.f32 %v187, %v178
    %v192 = vmul.f32 %v190, %v178
    %v193 = vadd.f32 %v191, 1e-12
    %v194 = vadd.f32 %v192, 1e-12
    %v195 = vrsqrt.pop %v193
    %v196 = vmul.f32 %v195, %v193
    %v197 = vmul.f32 %v196, %v195
    %v198 = vmul.f32 0.5, %v197
    %v199 = vsub.f32 1.5, %v198
    %v200 = vmul.f32 %v195, %v199
    %vm201 = vweird.f32 %v193
    %vm202 = vweird.f32 %v195
    %vm203 = vmor %vm201, %vm202
    %v204 = vsel %vm203, %v195, %v200
    %v205 = vrsqrt.pop %v194
    %v206 = vmul.f32 %v205, %v194
    %v207 = vmul.f32 %v206, %v205
    %v208 = vmul.f32 0.5, %v207
    %v209 = vsub.f32 1.5, %v208
    %v210 = vmul.f32 %v205, %v209
    %vm211 = vweird.f32 %v194
    %vm212 = vweird.f32 %v205
    %vm213 = vmor %vm211, %vm212
    %v214 = vsel %vm213, %v205, %v210
    %v215 = vmul.f32 %v181, %v204
    %v216 = vmul.f32 %v182, %v214
    %v217 = vld [vmem:[%s3] sm:$0x1]
    %v219 = vperm.slane %v217, 0
    %v221 = vmul.f32 %v215, %v219
    %v222 = vmul.f32 %v216, %v219
    %v223 = vld [vmem:[%s4] sm:$0x1]
    %v225 = vperm.slane %v223, 0
    %v227 = vadd.f32 %v221, %v225
    %v228 = vadd.f32 %v222, %v225
    %v229 = vpack.c.bf16 %v227, %v227
    %v230 = vpack.c.bf16 %v228, %v228
    %vm231 = vcmask 257024
    %232 = vst.msk [vmem:[#allocation2] sm:$0xf] %vm231, %v229
    %233 = vst.msk [vmem:[#allocation2 + $0x4] sm:$0xf] %vm231, %v230
    %vm234 = vcmask 7168
    %235 = vst.msk [vmem:[#allocation3] sm:$0xff] %vm234, -inf
    %236 = vst.msk [vmem:[#allocation3 + $0x8] sm:$0xff] %vm234, -inf
    %237 = vst.msk [vmem:[#allocation4] sm:$0xff] %vm234, 0.0
    %238 = vst.msk [vmem:[#allocation4 + $0x8] sm:$0xff] %vm234, 0.0
  $region33: #{mask_head_forward.1} parent=0 // pred_fallthru
    _
  %v239 = vld [vmem:[#allocation2] sm:$0xf]
  %v240 = vld [vmem:[#allocation2 + $0x4] sm:$0xf]
  %v241 = vld [vmem:[%s5] sm:$0xf]
  %v242 = vld [vmem:[%s5 + $0x4] sm:$0xf]
  %v243 = vld [vmem:[%s5 + $0x8] sm:$0xf]
  %v244 = vld [vmem:[%s5 + $0xc] sm:$0xf]
  %v245 = vld [vmem:[%s6] sm:$0x1]
  %v247 = vperm.slane %v245, 0
  %v251 = vunpack.c.l.b16 %v239
  %v252 = vunpack.c.l.b16 %v240
  %v253 = vpack.c.b16 %v252, %v251
  %v258 = vunpack.c.l.b16 %v241
  %v259 = vunpack.c.l.b16 %v242
  %v260 = vunpack.c.l.b16 %v243
  %v261 = vunpack.c.l.b16 %v244
  %v262 = vpack.c.b16 %v259, %v258
  %v263 = vpack.c.b16 %v261, %v260
  %vm266 = vcmask 261120
  %v268 = vsel %vm266, %v253, 0
  %270 = vmatpush.bf16.msra.mxu0 0
  %271 = vmatpush.bf16.msra.mxu0 0
  %272 = vmatpush.bf16.msra.mxu0 0
  %273 = vmatpush.bf16.msra.mxu0 0
  %274 = vmatpush.bf16.msra.mxu0 0
  %275 = vmatpush.bf16.msra.mxu0 0
  %276 = vmatpush.bf16.msra.mxu0 %v263
  %277 = vmatpush.bf16.msra.mxu0 %v262
  %278 = vmatmul.bf16.gmra.mxu0 %v268
  %v279 = vpop.f32.mrf.mxu0
  %v280 = vadd.f32 %v247, %v279
  %v281 = vpop.f32.mrf.mxu0
  %v282 = vadd.f32 %v247, %v281
  %283 = vdwg.mxu0
  %v284 = vpack.c.bf16 %v280, %v280
  %v285 = vpack.c.bf16 %v282, %v282
  %286 = vst [vmem:[%s7] sm:$0xf] %v284
  %287 = vst [vmem:[%s7 + $0x4] sm:$0xf] %v285
  %v288 = vld [vmem:[#allocation3] sm:$0xff]
  %v289 = vld [vmem:[#allocation3 + $0x8] sm:$0xff]
  %290 = vmax.xlane.f32.xlu0 %v280
  %v291 = vpop.xlane.xlu0 %290
  %292 = vmax.xlane.f32.xlu0 %v282
  %v293 = vpop.xlane.xlu0 %292
  %v294 = vmax.f32 %v288, %v291
  %v295 = vmax.f32 %v289, %v293
  %v296 = vld [vmem:[#allocation4] sm:$0xff]
  %v297 = vld [vmem:[#allocation4 + $0x8] sm:$0xff]
  %v298 = vsub.f32 %v288, %v294
  %v299 = vsub.f32 %v289, %v295
  %v300 = vmul.f32 %v298, 1.442695
  %v301 = vpow.pop %v300
  %v302 = vmul.f32 %v299, 1.442695
  %v303 = vpow.pop %v302
  %v304 = vmul.f32 %v296, %v301
  %v305 = vmul.f32 %v297, %v303
  %307 = vset.pattern.permute.xlu0 0
  %308 = vperm.xlu0 %307, %v294
  %v309 = vpop.permute.xlu0 %308
  %312 = vset.pattern.permute.xlu0 0
  %313 = vperm.xlu0 %312, %v295
  %v314 = vpop.permute.xlu0 %313
  %v316 = vsub.f32 %v280, %v309
  %v317 = vsub.f32 %v282, %v314
  %v318 = vmul.f32 %v316, 1.442695
  %v319 = vpow.pop %v318
  %v320 = vmul.f32 %v317, 1.442695
  %v321 = vpow.pop %v320
  %322 = vadd.xlane.f32.xlu0 %v319
  %v323 = vpop.xlane.xlu0 %322
  %324 = vadd.xlane.f32.xlu0 %v321
  %v325 = vpop.xlane.xlu0 %324
  %v326 = vadd.f32 %v304, %v323
  %v327 = vadd.f32 %v305, %v325
  %vm328 = vcmask 7168
  %329 = vst.msk [vmem:[#allocation4] sm:$0xff] %vm328, %v326
  %330 = vst.msk [vmem:[#allocation4 + $0x8] sm:$0xff] %vm328, %v327
  %331 = vst.msk [vmem:[#allocation3] sm:$0xff] %vm328, %v294
  %332 = vst.msk [vmem:[#allocation3 + $0x8] sm:$0xff] %vm328, %v295
  // Predicated region
  $region34: #{mask_head_forward.1} parent=0 // pred_check
    %p333 = pneg %p29
  $region35: #{mask_head_forward.1} parent=0 // pred_check_branch
    %335 = sbr.rel (%p333) target = $region37
  $region36: #{mask_head_forward.1} parent=0 // pred_region
    %v336 = vld [vmem:[#allocation3] sm:$0xff]
    %v337 = vld [vmem:[#allocation3 + $0x8] sm:$0xff]
    %v338 = vld [vmem:[#allocation4] sm:$0xff]
    %v339 = vld [vmem:[#allocation4 + $0x8] sm:$0xff]
    %v340 = vlog2.pop %v338
    %v341 = vmul.f32 %v340, 0.6931472
    %v342 = vlog2.pop %v339
    %v343 = vmul.f32 %v342, 0.6931472
    %v344 = vadd.f32 %v336, %v341
    %v345 = vadd.f32 %v337, %v343
    %346 = vst.msk [vmem:[%s8] sm:$0xff] %vm328, %v344
    %347 = vst.msk [vmem:[%s8 + $0x8] sm:$0xff] %vm328, %v345
  $region37: #{mask_head_forward.1} parent=0 // pred_fallthru
    _
  // Predicated region
  $region38: #{mask_head_forward.1} parent=0 // pred_check
    _
  $region39: #{mask_head_forward.1} parent=0 // pred_check_branch
    %349 = sbr.rel (0) target = $region41
  $region40: #{mask_head_forward.1} parent=0 // pred_region
    _
  $region41: #{mask_head_forward.1} parent=0 // pred_fallthru
    _
  // Predicated region
  $region42: #{mask_head_forward.1} parent=0 // pred_check
    _
  $region43: #{mask_head_forward.1} parent=0 // pred_check_branch
    %351 = sbr.rel (0) target = $region45
  $region44: #{mask_head_forward.1} parent=0 // pred_region
    _
  $region45: #{mask_head_forward.1} parent=0 // pred_fallthru
    _
  // Predicated region
  $region46: #{mask_head_forward.1} parent=0 // pred_check
    _
  $region47: #{mask_head_forward.1} parent=0 // pred_check_branch
    %353 = sbr.rel (0) target = $region49
  $region48: #{mask_head_forward.1} parent=0 // pred_region
    _
  $region49: #{mask_head_forward.1} parent=0 // pred_fallthru
    _
  // Predicated region
  $region50: #{mask_head_forward.1} parent=0 // pred_check
    _
  $region51: #{mask_head_forward.1} parent=0 // pred_check_branch
    %355 = sbr.rel (0) target = $region53
  $region52: #{mask_head_forward.1} parent=0 // pred_region
    _
  $region53: #{mask_head_forward.1} parent=0 // pred_fallthru
    _

</llo_original>
